<compile_context>
chip_gen: v6e
topology: v6e:2x2x1
jax: 0.10.0
libtpu: 0.0.40
codegen_flags: <defaults>
</compile_context>

<pallas_src>
import functools

import jax
import jax.numpy as jnp
from jax.experimental import pallas as pl
from jax.experimental.pallas import tpu as pltpu

_LANE = 128
_SUBLANE = 8
_MAX_TILE_ROWS = 32768

_TILE_ROWS_OVERRIDE = None          # test hook: force a tiny row tile


def _round_up(x, m):
    return (x + m - 1) // m * m


def _cdiv(a, b):
    return -(-a // b)


@functools.lru_cache(maxsize=1)
def _vmem_budget():
    """(per-input tile target bytes, scoped vmem_limit_bytes), generation-aware."""
    try:
        cap = int(pltpu.get_tpu_info().vmem_capacity_bytes)
    except Exception:
        cap = 64 * 1024 * 1024
    if cap >= 100 * 1024 * 1024:                 # v5e / v6e: 128 MiB VMEM
        return 4 * 1024 * 1024, 64 * 1024 * 1024
    return 2 * 1024 * 1024, 32 * 1024 * 1024     # v7x (64 MiB) / unknown


def _choose_tile_rows(n_rows, n_cols, itemsize, target_bytes):
    """Row tile: multiple of 8 (or the full extent), ~target_bytes of input data,
    balanced so the ragged last block wastes < 8 rows."""
    if _TILE_ROWS_OVERRIDE is not None:
        return min(_TILE_ROWS_OVERRIDE, n_rows)
    cap = target_bytes // max(1, n_cols * itemsize)
    cap = max(_SUBLANE, min(cap, _MAX_TILE_ROWS))
    cap = (cap // _SUBLANE) * _SUBLANE
    if cap >= n_rows:
        return n_rows                            # single full block
    n_blocks = _cdiv(n_rows, cap)
    return _round_up(_cdiv(n_rows, n_blocks), _SUBLANE)


def _focal_pow(w, gamma):
    """w**gamma: repeated multiplies (VPU only) for small integer gamma,
    clamped jnp.power otherwise."""
    g = float(gamma)
    if g == 0.0:
        return jnp.ones_like(w)
    if g == int(g) and 0 < int(g) <= 8:
        r = w
        for _ in range(int(g) - 1):
            r = r * w
        return r
    return jnp.power(jnp.maximum(w, 0.0), g)


def _last_block_mask(shape, flat_mode, limit):
    r = jax.lax.broadcasted_iota(jnp.int32, shape, 0)
    if flat_mode:
        c = jax.lax.broadcasted_iota(jnp.int32, shape, 1)
        idx = r * shape[1] + c
    else:
        idx = r
    return idx < limit


def _accumulate_partial(out_ref, loss, *, reduction, denom, n_blocks, steps,
                        last_block_limit, flat_mask):
    """Resident per-core (8,128) f32 accumulator: zero at step 0, add this tile's
    sum (masking only on the single ragged block), scale by 1/denom at the end."""
    core = pl.program_id(0)
    step = pl.program_id(1)
    gb = core * steps + step                    # global block index (pre-clamp)
    last_valid = n_blocks - 1

    @pl.when(step == 0)
    def _():
        out_ref[...] = jnp.zeros_like(out_ref)

    def _add(v):
        r = jax.lax.broadcasted_iota(jnp.int32, out_ref.shape, 0)
        c = jax.lax.broadcasted_iota(jnp.int32, out_ref.shape, 1)
        out_ref[...] = out_ref[...] + jnp.where((r == 0) & (c == 0), v, 0.0)

    if last_block_limit is None:
        # No ragged block: every in-range tile is fully valid.
        @pl.when(gb <= last_valid)
        def _():
            _add(jnp.sum(loss))
    else:
        # Masking only runs on the single ragged block (and duplicate/clamped
        # trailing steps past n_blocks are skipped entirely).
        @pl.when(gb < last_valid)
        def _():
            _add(jnp.sum(loss))

        @pl.when(gb == last_valid)
        def _():
            mask = _last_block_mask(loss.shape, flat_mask, last_block_limit)
            _add(jnp.sum(jnp.where(mask, loss, 0.0)))

    if reduction == "mean":
        @pl.when(step == steps - 1)
        def _():
            out_ref[...] = out_ref[...] * (1.0 / denom)


# ----------------------------------------------------------------------------
# Kernels
# ----------------------------------------------------------------------------
def _elementwise_loss(x_ref, t_ref, gamma, alpha):
    x = x_ref[...].astype(jnp.float32)
    t = t_ref[...].astype(jnp.float32)
    # One exp + one log1p per element; sigmoid reuses the shared exp.
    e = jnp.exp(-jnp.abs(x))
    bce = jnp.maximum(x, 0.0) - x * t + jnp.log1p(e)
    inv_1pe = 1.0 / (1.0 + e)
    probs = jnp.where(x >= 0.0, inv_1pe, e * inv_1pe)          # sigmoid(x)
    # 1 - p_t = probs + t - 2*probs*t  (fewer VPU ops than forming p_t first)
    one_minus_pt = probs + t - 2.0 * (probs * t)
    if alpha is not None:
        a = float(alpha)
        bce = ((1.0 - a) + (2.0 * a - 1.0) * t) * bce          # folded alpha_t
    return _focal_pow(one_minus_pt, gamma) * bce


def _elementwise_focal_kernel(x_ref, t_ref, out_ref, *, gamma, alpha, reduction,
                              denom, n_blocks, steps, last_block_limit,
                              flat_mask):
    """Binary / multi-label focal loss (BCE-with-logits path), one row tile."""
    loss = _elementwise_loss(x_ref, t_ref, gamma, alpha)
    if reduction == "none":
        out_ref[...] = loss.astype(out_ref.dtype)
        return
    _accumulate_partial(out_ref, loss, reduction=reduction, denom=denom,
                        n_blocks=n_blocks, steps=steps,
                        last_block_limit=last_block_limit, flat_mask=flat_mask)


def _multiclass_focal_kernel(x_ref, t_ref, *rest, gamma, use_alpha, reduction,
                             denom, n_blocks, steps, last_block_limit):
    """Multi-class focal loss: stable log-softmax + one-hot CE + focal weighting."""
    if use_alpha:
        a_ref, out_ref = rest
    else:
        (out_ref,) = rest

    x = x_ref[...].astype(jnp.float32)            # (TB, C)
    tgt = t_ref[...].astype(jnp.int32)            # (TB, 1)
    tb, c = x.shape
    col = jax.lax.broadcasted_iota(jnp.int32, (tb, c), 1)
    one_hot = col == tgt

    # Numerically stable log-softmax pieces over the class (lane) axis.
    m = jnp.max(x, axis=1, keepdims=True)
    shifted = x - m
    sum_e = jnp.sum(jnp.exp(shifted), axis=1, keepdims=True)
    log_sum_e = jnp.log(sum_e)
    shifted_t = jnp.sum(jnp.where(one_hot, shifted, 0.0), axis=1, keepdims=True)
    ce_t = log_sum_e - shifted_t                  # -log softmax(x)[target]
    p_t = jnp.exp(-ce_t)                          # target-class probability
    row_scale = _focal_pow(1.0 - p_t, gamma)      # (TB, 1)

    if use_alpha:
        alpha_vec = a_ref[...].astype(jnp.float32)                       # (1, C)
        alpha_t = jnp.sum(jnp.where(one_hot, alpha_vec, 0.0), axis=1,
                          keepdims=True)                                 # (TB, 1)
        row_scale = row_scale * alpha_t

    if reduction == "none":
        ce = jnp.where(one_hot, log_sum_e - shifted, 0.0)   # -one_hot*log_softmax
        out_ref[...] = (row_scale * ce).astype(out_ref.dtype)
        return

    # mean / sum: everything from here on is per-row (TB, 1) — no (TB, C) temps.
    _accumulate_partial(out_ref, row_scale * ce_t, reduction=reduction,
                        denom=denom, n_blocks=n_blocks, steps=steps,
                        last_block_limit=last_block_limit, flat_mask=False)


# ----------------------------------------------------------------------------
# pallas_call wrappers
# ----------------------------------------------------------------------------
def _reduction_grid(n_blocks):
    n_cores = 2 if n_blocks >= 2 else 1
    steps = _cdiv(n_blocks, n_cores)
    return n_cores, steps


def _call_elementwise(x2d, t2d, *, gamma, alpha, reduction, flat_total=None):
    rows, cols = x2d.shape
    tile_target, vmem_limit = _vmem_budget()
    tile_rows = _choose_tile_rows(rows, cols, jnp.dtype(x2d.dtype).itemsize,
                                  tile_target)
    n_blocks = _cdiv(rows, tile_rows)
    last_start = (n_blocks - 1) * tile_rows
    flat_mask = flat_total is not None
    if flat_mask:
        valid_last = flat_total - last_start * cols
        full_last = tile_rows * cols
        denom = float(flat_total)
    else:
        valid_last = rows - last_start
        full_last = tile_rows
        denom = float(rows * cols)
    last_block_limit = valid_last if valid_last < full_last else None

    alpha_f = None if alpha is None else float(alpha)

    if reduction == "none":
        kern = functools.partial(
            _elementwise_focal_kernel, gamma=gamma, alpha=alpha_f,
            reduction="none", denom=1.0, n_blocks=n_blocks, steps=n_blocks,
            last_block_limit=None, flat_mask=flat_mask)
        return pl.pallas_call(
            kern,
            out_shape=jax.ShapeDtypeStruct((rows, cols), x2d.dtype),
            grid=(n_blocks,),
            in_specs=[pl.BlockSpec((tile_rows, cols), lambda i: (i, 0)),
                      pl.BlockSpec((tile_rows, cols), lambda i: (i, 0))],
            out_specs=pl.BlockSpec((tile_rows, cols), lambda i: (i, 0)),
            compiler_params=pltpu.CompilerParams(
                dimension_semantics=("parallel",),
                vmem_limit_bytes=vmem_limit),
        )(x2d, t2d)

    n_cores, steps = _reduction_grid(n_blocks)
    last_valid = n_blocks - 1

    def row_map(c, i):
        # clamp so the (at most one) excess step re-reads a valid block; its
        # contribution is skipped inside the kernel.
        return (jnp.minimum(c * steps + i, last_valid), 0)

    kern = functools.partial(
        _elementwise_focal_kernel, gamma=gamma, alpha=alpha_f,
        reduction=reduction, denom=denom, n_blocks=n_blocks, steps=steps,
        last_block_limit=last_block_limit, flat_mask=flat_mask)
    partials = pl.pallas_call(
        kern,
        out_shape=jax.ShapeDtypeStruct((n_cores * _SUBLANE, _LANE), jnp.float32),
        grid=(n_cores, steps),
        in_specs=[pl.BlockSpec((tile_rows, cols), row_map),
                  pl.BlockSpec((tile_rows, cols), row_map)],
        out_specs=pl.BlockSpec((_SUBLANE, _LANE), lambda c, i: (c, 0)),
        compiler_params=pltpu.CompilerParams(
            dimension_semantics=("parallel", "arbitrary"),
            vmem_limit_bytes=vmem_limit),
    )(x2d, t2d)
    return jnp.sum(partials)


def _call_multiclass(logits, targets, alpha, *, gamma, reduction):
    b, c = logits.shape
    use_alpha = alpha is not None
    tile_target, vmem_limit = _vmem_budget()
    tile_rows = _choose_tile_rows(b, c, jnp.dtype(logits.dtype).itemsize,
                                  tile_target)
    n_blocks = _cdiv(b, tile_rows)
    last_start = (n_blocks - 1) * tile_rows
    valid_last = b - last_start
    last_block_limit = valid_last if valid_last < tile_rows else None

    tgt2d = targets.astype(jnp.int32).reshape(b, 1)
    args = [logits, tgt2d]
    if use_alpha:
        args.append(jnp.broadcast_to(
            jnp.asarray(alpha, jnp.float32).reshape(1, -1), (1, c)))

    if reduction == "none":
        in_specs = [pl.BlockSpec((tile_rows, c), lambda i: (i, 0)),
                    pl.BlockSpec((tile_rows, 1), lambda i: (i, 0))]
        if use_alpha:
            in_specs.append(pl.BlockSpec((1, c), lambda i: (0, 0)))
        kern = functools.partial(
            _multiclass_focal_kernel, gamma=gamma, use_alpha=use_alpha,
            reduction="none", denom=1.0, n_blocks=n_blocks, steps=n_blocks,
            last_block_limit=None)
        return pl.pallas_call(
            kern,
            out_shape=jax.ShapeDtypeStruct((b, c), logits.dtype),
            grid=(n_blocks,),
            in_specs=in_specs,
            out_specs=pl.BlockSpec((tile_rows, c), lambda i: (i, 0)),
            compiler_params=pltpu.CompilerParams(
                dimension_semantics=("parallel",),
                vmem_limit_bytes=vmem_limit),
        )(*args)

    n_cores, steps = _reduction_grid(n_blocks)
    last_valid = n_blocks - 1

    def row_map(cc, i):
        return (jnp.minimum(cc * steps + i, last_valid), 0)

    in_specs = [pl.BlockSpec((tile_rows, c), row_map),
                pl.BlockSpec((tile_rows, 1), row_map)]
    if use_alpha:
        in_specs.append(pl.BlockSpec((1, c), lambda cc, i: (0, 0)))

    kern = functools.partial(
        _multiclass_focal_kernel, gamma=gamma, use_alpha=use_alpha,
        reduction=reduction, denom=float(b * c), n_blocks=n_blocks, steps=steps,
        last_block_limit=last_block_limit)
    partials = pl.pallas_call(
        kern,
        out_shape=jax.ShapeDtypeStruct((n_cores * _SUBLANE, _LANE), jnp.float32),
        grid=(n_cores, steps),
        in_specs=in_specs,
        out_specs=pl.BlockSpec((_SUBLANE, _LANE), lambda cc, i: (cc, 0)),
        compiler_params=pltpu.CompilerParams(
            dimension_semantics=("parallel", "arbitrary"),
            vmem_limit_bytes=vmem_limit),
    )(*args)
    return jnp.sum(partials)


# ----------------------------------------------------------------------------
# FocalLoss module (mirrors the PyTorch class API)
# ----------------------------------------------------------------------------
class FocalLoss:
    def __init__(self, gamma=2, alpha=None, reduction="mean",
                 task_type="binary", num_classes=None):
        self.gamma = gamma
        self.alpha = alpha
        self.reduction = reduction
        self.task_type = task_type
        self.num_classes = num_classes
        if (task_type == "multi-class" and alpha is not None
                and not isinstance(alpha, (int, float))):
            assert num_classes is not None, \
                "num_classes must be specified for multi-class classification"
            self.alpha = jnp.asarray(alpha, jnp.float32)

    def __call__(self, inputs, targets):
        if self.task_type == "binary":
            return self._elementwise(inputs, targets)
        elif self.task_type == "multi-class":
            return self._multiclass(inputs, targets)
        elif self.task_type == "multi-label":
            return self._elementwise(inputs, targets)
        raise ValueError(f"Unsupported task_type '{self.task_type}'.")

    # binary & multi-label share the elementwise BCE-with-logits path
    def _elementwise(self, inputs, targets):
        # TODO(synk): per-class (tensor) alpha for binary/multi-label is not
        # supported (scalar only), matching practical torch usage.
        x = jnp.asarray(inputs)
        t = jnp.asarray(targets)
        if jnp.issubdtype(t.dtype, jnp.bool_):
            t = t.astype(x.dtype)
        orig_shape = x.shape

        if x.ndim >= 2:
            # Tile the native (..., C) layout directly — no pad / relayout copies.
            rows = 1
            for d in x.shape[:-1]:
                rows *= int(d)
            cols = int(x.shape[-1])
            out = _call_elementwise(x.reshape(rows, cols), t.reshape(rows, cols),
                                    gamma=self.gamma, alpha=self.alpha,
                                    reduction=self.reduction)
            if self.reduction in ("mean", "sum"):
                return out
            return out.reshape(orig_shape)

        # 1-D: flatten to a lane-dense (rows, 128) layout; the (<128 element)
        # zero-padded tail is masked in-kernel (mean/sum) or sliced off (none).
        n = int(x.size)
        n_rows = max(1, _cdiv(n, _LANE))
        pad = n_rows * _LANE - n
        xf = jnp.pad(x, (0, pad)).reshape(n_rows, _LANE)
        tf = jnp.pad(t, (0, pad)).reshape(n_rows, _LANE)
        out = _call_elementwise(xf, tf, gamma=self.gamma, alpha=self.alpha,
                                reduction=self.reduction, flat_total=n)
        if self.reduction in ("mean", "sum"):
            return out
        return out.reshape(-1)[:n]

    def _multiclass(self, inputs, targets):
        return _call_multiclass(jnp.asarray(inputs), jnp.asarray(targets),
                                self.alpha, gamma=self.gamma,
                                reduction=self.reduction)


# ----------------------------------------------------------------------------
# Pure-JAX references (correctness checking only)
# ----------------------------------------------------------------------------
def _ref_binary(x, t, gamma, alpha, reduction="mean"):
    x = x.astype(jnp.float32)
    t = t.astype(jnp.float32)
    probs = jax.nn.sigmoid(x)
    bce = jnp.maximum(x, 0.0) - x * t + jnp.log1p(jnp.exp(-jnp.abs(x)))
    p_t = probs * t + (1 - probs) * (1 - t)
    fw = (1 - p_t) ** gamma
    if alpha is not None:
        bce = (alpha * t + (1 - alpha) * (1 - t)) * bce
    loss = fw * bce
    if reduction == "mean":
        return jnp.mean(loss)
    if reduction == "sum":
        return jnp.sum(loss)
    return loss


def _ref_multiclass(x, t, gamma, alpha, num_classes, reduction="mean"):
    x = x.astype(jnp.float32)
    probs = jax.nn.softmax(x, axis=1)
    oh = jax.nn.one_hot(t, num_classes, dtype=jnp.float32)
    ce = -oh * jnp.log(probs)
    p_t = jnp.sum(probs * oh, axis=1, keepdims=True)
    fw = (1 - p_t) ** gamma
    if alpha is not None:
        ce = alpha[t][:, None] * ce
    loss = fw * ce
    if reduction == "mean":
        return jnp.mean(loss)
    if reduction == "sum":
        return jnp.sum(loss)
    return loss


if __name__ == "__main__":
    key = jax.random.PRNGKey(0)
    k1, k2, k3, k4, k5, k6, k7, k8 = jax.random.split(key, 8)

    B, C = 8, 16

    # ---- multi-class focal loss (gamma=2, per-class alpha, mean reduction)
    logits_mc = jax.random.normal(k1, (B, C), jnp.float32)
    targets_mc = jax.random.randint(k2, (B,), 0, C, jnp.int32)
    alpha_mc = list(jnp.linspace(0.1, 1.0, C).astype(jnp.float32))
    fl_mc = FocalLoss(gamma=2, alpha=alpha_mc, reduction="mean",
                      task_type="multi-class", num_classes=C)
    loss_mc = jax.block_until_ready(fl_mc(logits_mc, targets_mc))
    ref_mc = _ref_multiclass(logits_mc, targets_mc, 2,
                             jnp.asarray(alpha_mc), C, "mean")
    assert jnp.allclose(loss_mc, ref_mc, rtol=1e-5, atol=1e-6), (loss_mc, ref_mc)

    # ---- multi-class focal loss, reduction='none' (full (B, C) output)
    fl_mc_none = FocalLoss(gamma=2, alpha=alpha_mc, reduction="none",
                           task_type="multi-class", num_classes=C)
    loss_mc_none = jax.block_until_ready(fl_mc_none(logits_mc, targets_mc))
    ref_mc_none = _ref_multiclass(logits_mc, targets_mc, 2,
                                  jnp.asarray(alpha_mc), C, "none")
    assert loss_mc_none.shape == (B, C)
    assert jnp.allclose(loss_mc_none, ref_mc_none, rtol=1e-5, atol=1e-6)

    # ---- binary focal loss (1-D inputs), mean and sum reductions
    logits_b = jax.random.normal(k3, (B,), jnp.float32)
    targets_b = jax.random.bernoulli(k4, 0.5, (B,)).astype(jnp.float32)
    fl_b = FocalLoss(gamma=2, alpha=0.25, reduction="mean", task_type="binary")
    loss_b = jax.block_until_ready(fl_b(logits_b, targets_b))
    ref_b = _ref_binary(logits_b, targets_b, 2, 0.25, "mean")
    assert jnp.allclose(loss_b, ref_b, rtol=1e-5, atol=1e-6), (loss_b, ref_b)

    fl_bs = FocalLoss(gamma=2, alpha=0.25, reduction="sum", task_type="binary")
    loss_bs = jax.block_until_ready(fl_bs(logits_b, targets_b))
    ref_bs = _ref_binary(logits_b, targets_b, 2, 0.25, "sum")
    assert jnp.allclose(loss_bs, ref_bs, rtol=1e-5, atol=1e-6), (loss_bs, ref_bs)

    # ---- multi-label focal loss (gamma=2, no alpha, mean reduction)
    logits_ml = jax.random.normal(k5, (B, C), jnp.float32)
    targets_ml = jax.random.bernoulli(k6, 0.5, (B, C)).astype(jnp.float32)
    fl_ml = FocalLoss(gamma=2, alpha=None, reduction="mean",
                      task_type="multi-label")
    loss_ml = jax.block_until_ready(fl_ml(logits_ml, targets_ml))
    ref_ml = _ref_binary(logits_ml, targets_ml, 2, None, "mean")
    assert jnp.allclose(loss_ml, ref_ml, rtol=1e-5, atol=1e-6), (loss_ml, ref_ml)

    # ---- multi-block / ragged-last-block / two-partial reduction paths
    # (force a tiny 8-row tile so these small shapes span several grid blocks)
    _TILE_ROWS_OVERRIDE = 8

    logits_r = jax.random.normal(k7, (36, C), jnp.float32)
    targets_r = jax.random.bernoulli(k8, 0.5, (36, C)).astype(jnp.float32)
    fl_r = FocalLoss(gamma=2, alpha=0.4, reduction="mean",
                     task_type="multi-label")
    loss_r = jax.block_until_ready(fl_r(logits_r, targets_r))
    ref_r = _ref_binary(logits_r, targets_r, 2, 0.4, "mean")
    assert jnp.allclose(loss_r, ref_r, rtol=1e-5, atol=1e-6), (loss_r, ref_r)

    fl_rn = FocalLoss(gamma=2, alpha=0.4, reduction="none",
                      task_type="multi-label")
    loss_rn = jax.block_until_ready(fl_rn(logits_r, targets_r))
    ref_rn = _ref_binary(logits_r, targets_r, 2, 0.4, "none")
    assert jnp.allclose(loss_rn, ref_rn, rtol=1e-5, atol=1e-6)

    logits_f = jax.random.normal(k3, (1300,), jnp.float32)
    targets_f = jax.random.bernoulli(k4, 0.5, (1300,)).astype(jnp.float32)
    fl_f = FocalLoss(gamma=2, alpha=0.25, reduction="sum", task_type="binary")
    loss_f = jax.block_until_ready(fl_f(logits_f, targets_f))
    ref_f = _ref_binary(logits_f, targets_f, 2, 0.25, "sum")
    assert jnp.allclose(loss_f, ref_f, rtol=1e-5, atol=1e-5), (loss_f, ref_f)

    tgt_mc_r = jax.random.randint(k2, (36,), 0, C, jnp.int32)
    fl_mc_r = FocalLoss(gamma=2, alpha=alpha_mc, reduction="mean",
                        task_type="multi-class", num_classes=C)
    loss_mc_r = jax.block_until_ready(fl_mc_r(logits_r, tgt_mc_r))
    ref_mc_r = _ref_multiclass(logits_r, tgt_mc_r, 2, jnp.asarray(alpha_mc),
                               C, "mean")
    assert jnp.allclose(loss_mc_r, ref_mc_r, rtol=1e-5, atol=1e-6)

    _TILE_ROWS_OVERRIDE = None

    print("KERNEL_OK")
</pallas_src>

<mosaic_0001>
module attributes {stable_mosaic.version = 11 : i64} {
  func.func @_multiclass_focal_kernel(%arg0: i32, %arg1: i32, %arg2: memref<8x16xf32, #tpu.memory_space<vmem>>, %arg3: memref<8x1xi32, #tpu.memory_space<vmem>>, %arg4: memref<1x16xf32, #tpu.memory_space<vmem>>, %arg5: memref<8x128xf32, #tpu.memory_space<vmem>>) attributes {dimension_semantics = [#tpu.dimension_semantics<parallel>, #tpu.dimension_semantics<arbitrary>], iteration_bounds = array<i64: 1, 1>, scalar_prefetch = 0 : i64, scratch_operands = 0 : i64, tpu.core_type = #tpu.core_type<tc>, window_params = [{transform_indices = @transform_0, window_bounds = array<i64: 8, 16>}, {transform_indices = @transform_1, window_bounds = array<i64: 8, 1>}, {pipeline_mode = #tpu.pipeline_mode<synchronous>, transform_indices = @transform_2, window_bounds = array<i64: 1, 16>}, {transform_indices = @transform_3, window_bounds = array<i64: 8, 128>}]} {
    %c0 = arith.constant 0 : index
    %c0_0 = arith.constant 0 : index
    %0 = vector.load %arg2[%c0, %c0_0] : memref<8x16xf32, #tpu.memory_space<vmem>>, vector<8x16xf32>
    %c0_1 = arith.constant 0 : index
    %c0_2 = arith.constant 0 : index
    %1 = vector.load %arg3[%c0_1, %c0_2] : memref<8x1xi32, #tpu.memory_space<vmem>>, vector<8x1xi32>
    %2 = tpu.iota {dimensions = array<i32: 1>} : vector<8x16xi32>
    %3 = vector.broadcast %1 : vector<8x1xi32> to vector<8x16xi32>
    %4 = arith.cmpi eq, %2, %3 : vector<8x16xi32>
    %cst = arith.constant dense<0xFF800000> : vector<8xf32>
    %5 = vector.multi_reduction <maximumf>, %0, %cst [1] : vector<8x16xf32> to vector<8xf32>
    %6 = vector.shape_cast %5 : vector<8xf32> to vector<8x1xf32>
    %7 = vector.broadcast %6 : vector<8x1xf32> to vector<8x16xf32>
    %8 = arith.subf %0, %7 : vector<8x16xf32>
    %9 = math.exp %8 : vector<8x16xf32>
    %cst_3 = arith.constant dense<0.000000e+00> : vector<8xf32>
    %10 = vector.multi_reduction <add>, %9, %cst_3 [1] : vector<8x16xf32> to vector<8xf32>
    %11 = vector.shape_cast %10 : vector<8xf32> to vector<8x1xf32>
    %12 = math.log %11 : vector<8x1xf32>
    %cst_4 = arith.constant 0.000000e+00 : f32
    %13 = vector.broadcast %cst_4 : f32 to vector<8x16xf32>
    %14 = arith.select %4, %8, %13 : vector<8x16xi1>, vector<8x16xf32>
    %cst_5 = arith.constant dense<0.000000e+00> : vector<8xf32>
    %15 = vector.multi_reduction <add>, %14, %cst_5 [1] : vector<8x16xf32> to vector<8xf32>
    %16 = vector.shape_cast %15 : vector<8xf32> to vector<8x1xf32>
    %17 = arith.subf %12, %16 : vector<8x1xf32>
    %cst_6 = arith.constant 0.000000e+00 : f32
    %18 = vector.broadcast %cst_6 : f32 to vector<8x1xf32>
    %19 = arith.subf %18, %17 : vector<8x1xf32>
    %20 = math.exp %19 : vector<8x1xf32>
    %cst_7 = arith.constant 1.000000e+00 : f32
    %21 = vector.broadcast %cst_7 : f32 to vector<8x1xf32>
    %22 = arith.subf %21, %20 : vector<8x1xf32>
    %23 = arith.mulf %22, %22 : vector<8x1xf32>
    %c0_8 = arith.constant 0 : index
    %c0_9 = arith.constant 0 : index
    %24 = vector.load %arg4[%c0_8, %c0_9] : memref<1x16xf32, #tpu.memory_space<vmem>>, vector<1x16xf32>
    %cst_10 = arith.constant 0.000000e+00 : f32
    %25 = vector.shape_cast %24 : vector<1x16xf32> to vector<1x16xf32>
    %26 = vector.broadcast %25 : vector<1x16xf32> to vector<8x16xf32>
    %27 = vector.broadcast %cst_10 : f32 to vector<8x16xf32>
    %28 = arith.select %4, %26, %27 : vector<8x16xi1>, vector<8x16xf32>
    %cst_11 = arith.constant dense<0.000000e+00> : vector<8xf32>
    %29 = vector.multi_reduction <add>, %28, %cst_11 [1] : vector<8x16xf32> to vector<8xf32>
    %30 = vector.shape_cast %29 : vector<8xf32> to vector<8x1xf32>
    %31 = arith.mulf %23, %30 : vector<8x1xf32>
    %32 = arith.mulf %31, %17 : vector<8x1xf32>
    %c1_i32 = arith.constant 1 : i32
    %33 = arith.muli %arg0, %c1_i32 : i32
    %34 = arith.addi %33, %arg1 : i32
    %c0_i32 = arith.constant 0 : i32
    %35 = arith.cmpi eq, %arg1, %c0_i32 : i32
    %36 = arith.extui %35 : i1 to i32
    %c0_i32_12 = arith.constant 0 : i32
    %37 = arith.cmpi ne, %36, %c0_i32_12 : i32
    scf.if %37 {
      %cst_17 = arith.constant 0.000000e+00 : f32
      %44 = vector.broadcast %cst_17 : f32 to vector<8x128xf32>
      %c0_18 = arith.constant 0 : index
      %c0_19 = arith.constant 0 : index
      %45 = vector.load %arg5[%c0_18, %c0_19] : memref<8x128xf32, #tpu.memory_space<vmem>>, vector<8x128xf32>
      tpu.vector_store %arg5[%c0_18, %c0_19], %44 {strides = array<i32>} : memref<8x128xf32, #tpu.memory_space<vmem>>, vector<8x128xf32>,
    } else {
    }
    %c0_i32_13 = arith.constant 0 : i32
    %38 = arith.cmpi sle, %34, %c0_i32_13 : i32
    %39 = arith.extui %38 : i1 to i32
    %c0_i32_14 = arith.constant 0 : i32
    %40 = arith.cmpi ne, %39, %c0_i32_14 : i32
    scf.if %40 {
      %44 = vector.shape_cast %32 : vector<8x1xf32> to vector<1x8x1xf32>
      %cst_17 = arith.constant dense<0.000000e+00> : vector<1xf32>
      %45 = vector.multi_reduction <add>, %44, %cst_17 [1, 2] : vector<1x8x1xf32> to vector<1xf32>
      %46 = vector.shape_cast %45 : vector<1xf32> to vector<1x1x1xf32>
      %47 = vector.extract %46[0, 0, 0] : f32 from vector<1x1x1xf32>
      %48 = tpu.iota {dimensions = array<i32: 0>} : vector<8x128xi32>
      %49 = tpu.iota {dimensions = array<i32: 1>} : vector<8x128xi32>
      %c0_18 = arith.constant 0 : index
      %c0_19 = arith.constant 0 : index
      %50 = vector.load %arg5[%c0_18, %c0_19] : memref<8x128xf32, #tpu.memory_space<vmem>>, vector<8x128xf32>
      %c0_i32_20 = arith.constant 0 : i32
      %51 = vector.broadcast %c0_i32_20 : i32 to vector<8x128xi32>
      %52 = arith.cmpi eq, %48, %51 : vector<8x128xi32>
      %c0_i32_21 = arith.constant 0 : i32
      %53 = vector.broadcast %c0_i32_21 : i32 to vector<8x128xi32>
      %54 = arith.cmpi eq, %49, %53 : vector<8x128xi32>
      %55 = arith.andi %52, %54 : vector<8x128xi1>
      %cst_22 = arith.constant 0.000000e+00 : f32
      %56 = vector.broadcast %47 : f32 to vector<8x128xf32>
      %57 = vector.broadcast %cst_22 : f32 to vector<8x128xf32>
      %58 = arith.select %55, %56, %57 : vector<8x128xi1>, vector<8x128xf32>
      %59 = arith.addf %50, %58 : vector<8x128xf32>
      %c0_23 = arith.constant 0 : index
      %c0_24 = arith.constant 0 : index
      %60 = vector.load %arg5[%c0_23, %c0_24] : memref<8x128xf32, #tpu.memory_space<vmem>>, vector<8x128xf32>
      tpu.vector_store %arg5[%c0_23, %c0_24], %59 {strides = array<i32>} : memref<8x128xf32, #tpu.memory_space<vmem>>, vector<8x128xf32>,
    } else {
    }
    %c0_i32_15 = arith.constant 0 : i32
    %41 = arith.cmpi eq, %arg1, %c0_i32_15 : i32
    %42 = arith.extui %41 : i1 to i32
    %c0_i32_16 = arith.constant 0 : i32
    %43 = arith.cmpi ne, %42, %c0_i32_16 : i32
    scf.if %43 {
      %c0_17 = arith.constant 0 : index
      %c0_18 = arith.constant 0 : index
      %44 = vector.load %arg5[%c0_17, %c0_18] : memref<8x128xf32, #tpu.memory_space<vmem>>, vector<8x128xf32>
      %cst_19 = arith.constant 7.812500e-03 : f32
      %45 = vector.broadcast %cst_19 : f32 to vector<8x128xf32>
      %46 = arith.mulf %44, %45 : vector<8x128xf32>
      %c0_20 = arith.constant 0 : index
      %c0_21 = arith.constant 0 : index
      %47 = vector.load %arg5[%c0_20, %c0_21] : memref<8x128xf32, #tpu.memory_space<vmem>>, vector<8x128xf32>
      tpu.vector_store %arg5[%c0_20, %c0_21], %46 {strides = array<i32>} : memref<8x128xf32, #tpu.memory_space<vmem>>, vector<8x128xf32>,
    } else {
    }
    return
  }
  func.func @transform_0(%arg0: i32, %arg1: i32) -> (i32, i32) {
    %c1_i32 = arith.constant 1 : i32
    %0 = arith.muli %arg0, %c1_i32 : i32
    %1 = arith.addi %0, %arg1 : i32
    %c0_i32 = arith.constant 0 : i32
    %2 = arith.minsi %1, %c0_i32 : i32
    %c0_i32_0 = arith.constant 0 : i32
    %c0_i32_1 = arith.constant 0 : i32
    return %2, %c0_i32_0 : i32, i32
  }
  func.func @transform_1(%arg0: i32, %arg1: i32) -> (i32, i32) {
    %c1_i32 = arith.constant 1 : i32
    %0 = arith.muli %arg0, %c1_i32 : i32
    %1 = arith.addi %0, %arg1 : i32
    %c0_i32 = arith.constant 0 : i32
    %2 = arith.minsi %1, %c0_i32 : i32
    %c0_i32_0 = arith.constant 0 : i32
    %c0_i32_1 = arith.constant 0 : i32
    return %2, %c0_i32_0 : i32, i32
  }
  func.func @transform_2(%arg0: i32, %arg1: i32) -> (i32, i32) {
    %c0_i32 = arith.constant 0 : i32
    %c0_i32_0 = arith.constant 0 : i32
    %c0_i32_1 = arith.constant 0 : i32
    return %c0_i32, %c0_i32_0 : i32, i32
  }
  func.func @transform_3(%arg0: i32, %arg1: i32) -> (i32, i32) {
    %c0_i32 = arith.constant 0 : i32
    %c0_i32_0 = arith.constant 0 : i32
    return %arg0, %c0_i32 : i32, i32
  }
}

</mosaic_0001>

<llo_original>
// kernel: tpu_custom_call.1
$region0: #{tpu_custom_call.1}
  #allocation0 [shape = 'u32[]', space=smem, size = 0x4, offset = 0x4, fixed_abs, tag = 'smem constant byte address 0x4 - core index']
  #allocation1 [shape = 'u32[144,128]{1,0:T(1,128)}', space=vmem, size = 0x12000, scoped, tag = 'internal scratch']
  %s0 = inlined_call_operand.vmem [shape: f32[8,16], index: 0, kind: input, shape index: {}]
  %s1 = inlined_call_operand.vmem [shape: s32[8,1], index: 1, kind: input, shape index: {}]
  %s2 = inlined_call_operand.vmem [shape: f32[1,16], index: 2, kind: input, shape index: {}]
  %s3 = inlined_call_operand.hbm [shape: f32[8,128], index: 3, kind: output, shape index: {}]
  %s4 = sld [smem:[#allocation0]]
  $region34: #{tpu_custom_call.1} parent=0
    _
  %s6 = ssub.s32 1, %s4
  %s7 = scalar_select 0, %s6, %s4
  $region1: #{tpu_custom_call.1} parent=0
    #allocation2 [shape = 'u8[4096]{0}', space=vmem, size = 0x1000, scoped, tag = 'output window, operand 0, single buffered']
    #allocation3 [shape = 's32[1]{0}', space=sflag, size = 0x4, scoped, tag = 'scoped memory for tpu_custom_call.1']
    %8 = vsyncpa [#allocation3], 0
    // Predicated region
    $region2: #{tpu_custom_call.1} parent=1 // pred_check
      _
    $region3: #{tpu_custom_call.1} parent=1 // pred_check_branch
      %10 = sbr.rel (0) target = $region5
    $region4: #{tpu_custom_call.1} parent=1 // pred_region
      %s11 = sadd.s32 0, 0
      %p12 = scmp.lt.s32.totalorder %s11, 0
      %s13 = scalar_select %p12, %s11, 0
      %p14 = scmp.lt.s32.totalorder %s13, 0
      %s15 = scalar_select %p14, %s13, 0
      %s16 = smul.addr %s15, 8
      %s17 = scalar_lea.vmem %s0, %s16
      %s18 = sadd.s32 0, 0
      %p19 = scmp.lt.s32.totalorder %s18, 0
      %s20 = scalar_select %p19, %s18, 0
    $region5: #{tpu_custom_call.1} parent=1 // pred_fallthru
      _
    // Predicated region
    $region6: #{tpu_custom_call.1} parent=1 // pred_check
      _
    $region7: #{tpu_custom_call.1} parent=1 // pred_check_branch
      %22 = sbr.rel (0) target = $region9
    $region8: #{tpu_custom_call.1} parent=1 // pred_region
      %s23 = sadd.s32 0, 0
      %p24 = scmp.lt.s32.totalorder %s23, 0
      %s25 = scalar_select %p24, %s23, 0
      %p26 = scmp.lt.s32.totalorder %s25, 0
      %s27 = scalar_select %p26, %s25, 0
      %s28 = smul.addr %s27, 8
      %s29 = scalar_lea.vmem %s1, %s28
      %s30 = sadd.s32 0, 0
      %p31 = scmp.lt.s32.totalorder %s30, 0
      %s32 = scalar_select %p31, %s30, 0
    $region9: #{tpu_custom_call.1} parent=1 // pred_fallthru
      _
    // Predicated region
    $region10: #{tpu_custom_call.1} parent=1 // pred_check
      _
    $region11: #{tpu_custom_call.1} parent=1 // pred_check_branch
      %34 = sbr.rel (0) target = $region13
    $region12: #{tpu_custom_call.1} parent=1 // pred_region
      _
    $region13: #{tpu_custom_call.1} parent=1 // pred_fallthru
      _
    %s35 = sadd.s32 0, 0
    %p36 = scmp.lt.s32.totalorder %s35, 0
    %s37 = scalar_select %p36, %s35, 0
    %p38 = scmp.lt.s32.totalorder %s37, 0
    %s39 = scalar_select %p38, %s37, 0
    %s40 = smul.addr %s39, 8
    %s41 = scalar_lea.vmem %s0, %s40
    %s42 = sadd.s32 0, 0
    %p43 = scmp.lt.s32.totalorder %s42, 0
    %s44 = scalar_select %p43, %s42, 0
    %p45 = scmp.lt.s32.totalorder %s44, 0
    %s46 = scalar_select %p45, %s44, 0
    %s47 = smul.addr %s46, 8
    %s48 = scalar_lea.vmem %s1, %s47
    %s49 = sadd.s32 0, 0
    %p50 = scmp.lt.s32.totalorder %s49, 0
    %s51 = scalar_select %p50, %s49, 0
    %p52 = scmp.lt.s32.totalorder %s51, 0
    %s53 = scalar_select %p52, %s51, 0
    %s54 = smul.addr %s53, 8
    %s55 = scalar_lea.vmem %s0, %s54
    %s56 = sadd.s32 0, 0
    %p57 = scmp.lt.s32.totalorder %s56, 0
    %s58 = scalar_select %p57, %s56, 0
    %s59 = sadd.s32 0, 0
    %p60 = scmp.lt.s32.totalorder %s59, 0
    %s61 = scalar_select %p60, %s59, 0
    %p62 = scmp.lt.s32.totalorder %s61, 0
    %s63 = scalar_select %p62, %s61, 0
    %s64 = smul.addr %s63, 8
    %s65 = scalar_lea.vmem %s1, %s64
    %s66 = sadd.s32 0, 0
    %p67 = scmp.lt.s32.totalorder %s66, 0
    %s68 = scalar_select %p67, %s66, 0
    %v69 = vld [vmem:[%s55] sm:$0xff]
    %v70 = vld [vmem:[%s65] sm:$0xff]
    %v71 = vlaneseq
    %v72 = vand.u32 %v71, 127
    %73 = vset.pattern.permute.xlu0 0
    %74 = vperm.xlu0 %73, %v70
    %v75 = vpop.permute.xlu0 %74
    %vm76 = vcmp.eq.s32.totalorder %v72, %v75
    %vm77 = vcmask 130048
    %v78 = vsel %vm77, %v69, -inf
    %79 = vmax.xlane.f32.xlu0 %v78
    %v80 = vpop.xlane.xlu0 %79
    %v81 = vsub.f32 %v69, %v80
    %v82 = vmul.f32 %v81, 1.442695
    %v83 = vpow.pop %v82
    %v84 = vsel %vm77, %v83, 0.0
    %85 = vadd.xlane.f32.xlu0 %v84
    %v86 = vpop.xlane.xlu0 %85
    %v87 = vlog2.pop %v86
    %v88 = vmul.f32 %v87, 0.6931472
    %v89 = vsel %vm76, %v81, 0.0
    %v90 = vsel %vm77, %v89, 0.0
    %91 = vadd.xlane.f32.xlu0 %v90
    %v92 = vpop.xlane.xlu0 %91
    %v93 = vsub.f32 %v88, %v92
    %v94 = vsub.f32 0.0, %v93
    %v95 = vmul.f32 %v94, 1.442695
    %v96 = vpow.pop %v95
    %v97 = vsub.f32 1.0, %v96
    %v98 = vmul.f32 %v97, %v97
    %v99 = vld [vmem:[%s2] sm:$0x1]
    %v101 = vlaneseq
    %v102 = vshrl.u32 %v101, 7
    %v103 = vsub.s32 0, %v102
    %v104 = vrot.slane %v99, %v103
    %v106 = vsel %vm76, %v104, 0.0
    %v107 = vsel %vm77, %v106, 0.0
    %108 = vadd.xlane.f32.xlu0 %v107
    %v109 = vpop.xlane.xlu0 %108
    %v110 = vmul.f32 %v98, %v109
    %v111 = vmul.f32 %v110, %v93
    %s112 = sadd.s32 0, 0
    %p113 = scmp.eq.s32.totalorder 0, 0
    // Predicated region
    $region14: #{tpu_custom_call.1} parent=1 // pred_check
      %p114 = pneg %p113
    $region15: #{tpu_custom_call.1} parent=1 // pred_check_branch
      %116 = sbr.rel (%p114) target = $region17
    $region16: #{tpu_custom_call.1} parent=1 // pred_region
      %117 = vst [vmem:[#allocation2] sm:$0xff] 0.0
    $region17: #{tpu_custom_call.1} parent=1 // pred_fallthru
      _
    %p118 = scmp.le.s32.totalorder %s112, 0
    // Predicated region
    $region18: #{tpu_custom_call.1} parent=1 // pred_check
      %p119 = pneg %p118
    $region19: #{tpu_custom_call.1} parent=1 // pred_check_branch
      %121 = sbr.rel (%p119) target = $region21
    $region20: #{tpu_custom_call.1} parent=1 // pred_region
      %vm122 = vcmask 7168
      %v123 = vsel %vm122, %v111, 0.0
      %124 = vadd.xlane.f32.xlu0 %v123
      %v125 = vpop.xlane.xlu0 %124
      %v126 = vrot.slane %v125, 4
      %v127 = vadd.f32 %v125, %v126
      %v128 = vrot.slane %v127, 2
      %v129 = vadd.f32 %v127, %v128
      %v130 = vrot.slane %v129, 1
      %v131 = vadd.f32 %v129, %v130
      %s132 = vtos %v131
      %v133 = vlaneseq
      %v134 = vshrl.u32 %v133, 7
      %v135 = vld [vmem:[#allocation2] sm:$0xff]
      %vm136 = vcmp.eq.s32.totalorder %v134, 0
      %vm137 = vcmp.eq.s32.totalorder %v72, 0
      %vm138 = vmand %vm136, %vm137
      %v139 = vstv %s132
      %v140 = vsel %vm138, %v139, 0.0
      %v141 = vadd.f32 %v135, %v140
      %142 = vst [vmem:[#allocation2] sm:$0xff] %v141
    $region21: #{tpu_custom_call.1} parent=1 // pred_fallthru
      _
    // Predicated region
    $region22: #{tpu_custom_call.1} parent=1 // pred_check
      %p143 = pneg %p113
    $region23: #{tpu_custom_call.1} parent=1 // pred_check_branch
      %145 = sbr.rel (%p143) target = $region25
    $region24: #{tpu_custom_call.1} parent=1 // pred_region
      %v146 = vld [vmem:[#allocation2] sm:$0xff]
      %v147 = vmul.f32 %v146, 0.0078125
      %148 = vst [vmem:[#allocation2] sm:$0xff] %v147
    $region25: #{tpu_custom_call.1} parent=1 // pred_fallthru
      _
    // Predicated region
    $region26: #{tpu_custom_call.1} parent=1 // pred_check
      _
    $region27: #{tpu_custom_call.1} parent=1 // pred_check_branch
      %150 = sbr.rel (0) target = $region29
    $region28: #{tpu_custom_call.1} parent=1 // pred_region
      %s152 = ssub.s32 128, 128
      %153 = vsyncadd [#allocation3], %s152
      %s155 = sshll.u32 [#allocation2], 4
      %s156 = int_to_ptr.vmem [resolvable:$true] %s155
      %158 = dma.vmem_to_hbm [thread:$0]  %s156, 128, %s3, [#allocation3]
    $region29: #{tpu_custom_call.1} parent=1 // pred_fallthru
      _
    // Predicated region
    $region30: #{tpu_custom_call.1} parent=1 // pred_check
      _
    $region31: #{tpu_custom_call.1} parent=1 // pred_check_branch
      %160 = sbr.rel (0) target = $region33
    $region32: #{tpu_custom_call.1} parent=1 // pred_region
      %161 = dma.done [#allocation3], 128
    $region33: #{tpu_custom_call.1} parent=1 // pred_fallthru
      _
    %162 = vsyncpa [#allocation3], 1

</llo_original>
